<compile_context>
chip_gen: v7x
topology: tpu7x:2x2x1
jax: 0.10.0
libtpu: 0.0.40
codegen_flags: <defaults>
</compile_context>

<pallas_src>
import functools

import numpy as np
import jax
import jax.numpy as jnp
from jax.experimental import pallas as pl
from jax.experimental.pallas import tpu as pltpu


# --------------------------------------------------------------------------------------
# Bilinear (align_corners=True) interpolation matrices
# --------------------------------------------------------------------------------------
def bilinear_matrix_np(n_in: int, n_out: int) -> np.ndarray:
    """1-D bilinear resize matrix A (n_out, n_in), align_corners=True (numpy, static)."""
    if n_in == 1:
        return np.ones((n_out, 1), np.float32)
    pos = np.arange(n_out, dtype=np.float64) * (n_in - 1) / (n_out - 1)
    lo = np.clip(np.floor(pos).astype(np.int64), 0, n_in - 2)
    frac = pos - lo
    mat = np.zeros((n_out, n_in), np.float64)
    rows = np.arange(n_out)
    mat[rows, lo] = 1.0 - frac
    mat[rows, lo + 1] += frac
    return mat.astype(np.float32)


def bilinear_matrix(n_in: int, n_out: int) -> jnp.ndarray:
    """Same matrix, jnp version (used only by the pure-JAX reference)."""
    if n_in == 1:
        return jnp.ones((n_out, 1), jnp.float32)
    pos = jnp.arange(n_out, dtype=jnp.float32) * (n_in - 1) / (n_out - 1)
    lo = jnp.clip(jnp.floor(pos).astype(jnp.int32), 0, n_in - 2)
    frac = pos - lo.astype(jnp.float32)
    rows = jnp.arange(n_out)
    mat = jnp.zeros((n_out, n_in), jnp.float32)
    mat = mat.at[rows, lo].set(1.0 - frac)
    mat = mat.at[rows, lo + 1].add(frac)
    return mat


# --------------------------------------------------------------------------------------
# Static planning: batch group, output-row tile, input-row band, VMEM accounting
# --------------------------------------------------------------------------------------
def _divisors(n: int):
    return [d for d in range(1, n + 1) if n % d == 0]


def _vmem_capacity_bytes() -> int:
    """Physical VMEM per core (fallback: 64 MiB, the smallest across v5e/v6e/v7x)."""
    try:
        info = pltpu.get_tpu_info()
        for name in ("vmem_capacity_bytes", "vmem_bytes", "vmem_size_bytes"):
            v = getattr(info, name, None)
            if v:
                return int(v)
    except Exception:
        pass
    return 64 * 1024 * 1024


def _band_geometry(A_h: np.ndarray, rpt: int, H: int):
    """Per-tile contributing low-res row band, derived from A_h's nonzero structure."""
    Ho = A_h.shape[0]
    n_tiles = Ho // rpt
    lows, spans = [], []
    for j in range(n_tiles):
        nz = np.nonzero(np.any(A_h[j * rpt:(j + 1) * rpt] != 0.0, axis=0))[0]
        lows.append(int(nz[0]))
        spans.append(int(nz[-1]) - int(nz[0]) + 1)
    band = max(spans)
    starts = [min(lo, H - band) for lo in lows]   # clamp; widening only adds zero coeffs
    return band, starts


def _pick_plan(N, Cout, H, W, Ho, Wo, A_h, vmem_budget):
    """Choose (Nb images per group, rows-per-tile) and the band geometry.

    Preferences:
      * Nb as large as possible with M = Nb*Cout <= 256 (MXU M-dim occupancy).
      * Smallest output-row tile whose lane width rpt*Wo >= 512 (lane-dense stores at
        the measured roofline knee while minimizing banded-K traffic / FLOPs).
      * All double-buffered blocks (K, z, x2, out) must fit `vmem_budget`.
      * Only force >= 2 hw tiles when the batch grid alone is 1 (megacore on v7x).
    """
    nb_cands = [d for d in sorted(_divisors(N), reverse=True) if d * Cout <= 256] or [1]
    aligned = [r for r in _divisors(Ho) if (r * Wo) % 128 == 0] or [Ho]
    target = min(512, Ho * Wo)
    pref = sorted([r for r in aligned if r * Wo >= target]) + \
        sorted([r for r in aligned if r * Wo < target], reverse=True)

    for Nb in nb_cands:
        G, M = N // Nb, Nb * Cout
        cands = pref
        if G < 2:
            multi = [r for r in pref if Ho // r >= 2]
            cands = multi + [r for r in pref if Ho // r < 2]
        for rpt in cands:
            band, starts = _band_geometry(A_h, rpt, H)
            bandw, thw = band * W, rpt * Wo
            # double-buffered f32 blocks: K + z + x2 + out (+ bias, negligible)
            est = 8 * (bandw * thw + M * bandw + 2 * M * thw) + 8 * M
            if est <= vmem_budget:
                return Nb, G, M, rpt, Ho // rpt, band, starts, bandw, thw
    raise ValueError(
        "Up Pallas kernel: no (batch-group, row-tile) configuration fits the VMEM budget "
        f"of {vmem_budget} bytes for N={N}, Cout={Cout}, H={H}, W={W}.")


# --------------------------------------------------------------------------------------
# Pallas kernel: banded upsample matmul + folded bias + LeakyReLU + skip add
# --------------------------------------------------------------------------------------
def up_kernel(z_ref, k_ref, b_ref, x2_ref, o_ref):
    # z_ref : (M, band*W)    BN-folded 1x1-conv output, banded rows, Nb images stacked on M
    # k_ref : (band*W, thw)  banded fused bilinear-upsample matrix (kron(A_h, A_w) tile)
    # b_ref : (M, 1)         folded conv-bias + BN shift
    # x2_ref / o_ref : (M, thw)   skip / output tile (lane-dense, thw % 128 == 0)
    y = jnp.dot(z_ref[...], k_ref[...], preferred_element_type=jnp.float32)   # MXU
    y = y + b_ref[...]
    y = jnp.maximum(y, 0.01 * y)                                              # LeakyReLU
    o_ref[...] = (y + x2_ref[...]).astype(o_ref.dtype)


# --------------------------------------------------------------------------------------
# Wrapper: BN folding, hoisted low-res conv, banding, pallas_call
# --------------------------------------------------------------------------------------
@functools.partial(jax.jit, static_argnames=("compute_dtype",))
def up_forward(x1_nchw, x2_nchw, conv_w, conv_b, gamma, beta, run_mean, run_var,
               compute_dtype=jnp.float32):
    """Forward pass of `Up` (eval-mode BN). Inputs/outputs are NCHW like PyTorch."""
    eps = 1e-5
    N, Cin, H, W = x1_nchw.shape
    Cout = conv_w.shape[0]
    Ho, Wo = 2 * H, 2 * W
    HW, HoWo = H * W, Ho * Wo
    assert x2_nchw.shape == (N, Cout, Ho, Wo)

    # ---- fold eval-mode BatchNorm into the 1x1 conv ------------------------------------
    scale = gamma / jnp.sqrt(run_var + eps)                                   # (Cout,)
    ws = (conv_w.reshape(Cout, Cin) * scale[:, None]).astype(jnp.float32)     # (Cout, Cin)
    bias = ((conv_b - run_mean) * scale + beta).astype(jnp.float32)           # (Cout,)

    # ---- 1x1 conv at LOW resolution, hoisted out of the tile loop ----------------------
    # One small XLA batched matmul per call; the Pallas kernel only touches the large
    # upsampled tensors (x2 / out) and the banded K / z streams.
    x1 = x1_nchw.reshape(N, Cin, HW).astype(jnp.float32)
    z = jnp.einsum('oc,ncs->nos', ws, x1)                                     # (N, Cout, HW)

    # ---- static tile / band plan --------------------------------------------------------
    A_h = bilinear_matrix_np(H, Ho)                                           # (Ho, H)
    A_w = bilinear_matrix_np(W, Wo)                                           # (Wo, W)
    vmem_cap = _vmem_capacity_bytes()
    vmem_limit = min(int(0.75 * vmem_cap), 100 * 1024 * 1024)  # ~48 MiB v7x, ~96 MiB v5e/v6e
    Nb, G, M, rpt, n_tiles, band, band_starts, bandw, thw = _pick_plan(
        N, Cout, H, W, Ho, Wo, A_h, vmem_budget=vmem_limit - (4 << 20))

    # ---- banded fused upsample tiles: K_j = kron(A_h[tile_j rows, band_j], A_w) --------
    k_tiles = []
    for j, bs in enumerate(band_starts):
        ah = A_h[j * rpt:(j + 1) * rpt, bs:bs + band]                         # (rpt, band)
        k_tiles.append(np.einsum('rh,ow->hwro', ah, A_w).reshape(bandw, thw))
    K_banded = jnp.asarray(np.stack(k_tiles, 0), dtype=compute_dtype)         # (T, bandw, thw)

    # ---- band + batch-group the conv output (contiguous reshapes, no transposes) -------
    zr = z.reshape(G, Nb, Cout, H, W)
    z_banded = jnp.stack(
        [zr[:, :, :, bs:bs + band, :].reshape(G, M, bandw) for bs in band_starts],
        axis=1).astype(compute_dtype)                                         # (G, T, M, bandw)

    bias_m = jnp.tile(bias, (Nb,)).reshape(M, 1)                              # (M, 1)
    x2 = x2_nchw.reshape(G, M, HoWo).astype(jnp.float32)                      # (G, M, HoWo)

    flops = 2 * G * n_tiles * M * bandw * thw + 4 * G * M * HoWo
    bytes_accessed = (z_banded.size * z_banded.dtype.itemsize
                      + K_banded.size * K_banded.dtype.itemsize
                      + 2 * x2.size * 4 + M * 4)

    out = pl.pallas_call(
        up_kernel,
        out_shape=jax.ShapeDtypeStruct((G, M, HoWo), jnp.float32),
        grid=(n_tiles, G),                 # tile axis OUTER -> K tile reused across batch
        in_specs=[
            pl.BlockSpec((None, None, M, bandw), lambda j, g: (g, j, 0, 0)),  # banded z
            pl.BlockSpec((None, bandw, thw), lambda j, g: (j, 0, 0)),         # banded K tile
            pl.BlockSpec((M, 1), lambda j, g: (0, 0)),                        # folded bias
            pl.BlockSpec((None, M, thw), lambda j, g: (g, 0, j)),             # skip x2 tile
        ],
        out_specs=pl.BlockSpec((None, M, thw), lambda j, g: (g, 0, j)),
        compiler_params=pltpu.CompilerParams(
            dimension_semantics=("parallel", "parallel"),
            vmem_limit_bytes=int(vmem_limit)),
        cost_estimate=pl.CostEstimate(
            flops=int(flops), transcendentals=0, bytes_accessed=int(bytes_accessed)),
    )(z_banded, K_banded, bias_m, x2)

    # Free contiguous reshape back to NCHW (memory layout already matches).
    return out.reshape(N, Cout, Ho, Wo)


# --------------------------------------------------------------------------------------
# Pure-JAX reference (same math as the PyTorch module in eval mode)
# --------------------------------------------------------------------------------------
def reference_up(x1, x2, conv_w, conv_b, gamma, beta, run_mean, run_var):
    eps = 1e-5
    N, Cin, H, W = x1.shape
    Cout = conv_w.shape[0]
    A_h = bilinear_matrix(H, 2 * H)
    A_w = bilinear_matrix(W, 2 * W)
    u = jnp.einsum('oh,nchw->ncow', A_h, x1)
    u = jnp.einsum('pw,ncow->ncop', A_w, u)                                   # (N,Cin,Ho,Wo)
    y = jnp.einsum('dc,ncop->ndop', conv_w.reshape(Cout, Cin), u)
    y = y + conv_b[None, :, None, None]
    y = gamma[None, :, None, None] * (y - run_mean[None, :, None, None]) \
        / jnp.sqrt(run_var[None, :, None, None] + eps) + beta[None, :, None, None]
    y = jnp.where(y >= 0, y, 0.01 * y)
    return y + x2


# --------------------------------------------------------------------------------------
# Demo / self-check
# --------------------------------------------------------------------------------------
def _run_case(key, N, Cin, Cout, H, W, compute_dtype, atol, rtol, label):
    k1, k2, k3, k4, k5, k6, k7, k8 = jax.random.split(key, 8)
    Ho, Wo = 2 * H, 2 * W
    x1 = jax.random.normal(k1, (N, Cin, H, W), jnp.float32)          # NCHW, like PyTorch
    x2 = jax.random.normal(k2, (N, Cout, Ho, Wo), jnp.float32)
    conv_w = 0.1 * jax.random.normal(k3, (Cout, Cin, 1, 1), jnp.float32)
    conv_b = 0.1 * jax.random.normal(k4, (Cout,), jnp.float32)
    gamma = 1.0 + 0.1 * jax.random.normal(k5, (Cout,), jnp.float32)
    beta = 0.1 * jax.random.normal(k6, (Cout,), jnp.float32)
    run_mean = 0.1 * jax.random.normal(k7, (Cout,), jnp.float32)
    run_var = 1.0 + 0.2 * jax.random.uniform(k8, (Cout,), jnp.float32)

    out = up_forward(x1, x2, conv_w, conv_b, gamma, beta, run_mean, run_var,
                     compute_dtype=compute_dtype)
    out = jax.block_until_ready(out)
    ref = reference_up(x1, x2, conv_w, conv_b, gamma, beta, run_mean, run_var)
    assert out.shape == (N, Cout, Ho, Wo)
    err = float(jnp.max(jnp.abs(out - ref)))
    assert jnp.allclose(out, ref, atol=atol, rtol=rtol), f"{label}: max abs err = {err}"


if __name__ == "__main__":
    key = jax.random.PRNGKey(0)
    ka, kb, kc = jax.random.split(key, 3)
    # A: batched case -> 4 images stacked on the MXU M dim (M=32), 2 banded hw tiles.
    _run_case(ka, N=4, Cin=4, Cout=8, H=16, W=16,
              compute_dtype=jnp.float32, atol=1e-3, rtol=1e-3, label="case_a_f32")
    # B: batch-1 case -> hw axis split for megacore, 8 banded tiles (band << H).
    _run_case(kb, N=1, Cin=8, Cout=16, H=32, W=32,
              compute_dtype=jnp.float32, atol=1e-3, rtol=1e-3, label="case_b_f32")
    # C: bf16 MXU operands (v6e/v7x fast path), f32 accumulation, looser tolerance.
    _run_case(kc, N=4, Cin=4, Cout=8, H=16, W=16,
              compute_dtype=jnp.bfloat16, atol=5e-2, rtol=5e-2, label="case_c_bf16")
    print("KERNEL_OK")
</pallas_src>

<mosaic_0001>
module attributes {stable_mosaic.version = 11 : i64} {
  func.func @up_kernel(%arg0: i32, %arg1: i32, %arg2: memref<1x1x32x144xf32, #tpu.memory_space<vmem>>, %arg3: memref<1x144x512xf32, #tpu.memory_space<vmem>>, %arg4: memref<32x1xf32, #tpu.memory_space<vmem>>, %arg5: memref<1x32x512xf32, #tpu.memory_space<vmem>>, %arg6: memref<1x32x512xf32, #tpu.memory_space<vmem>>) attributes {dimension_semantics = [#tpu.dimension_semantics<parallel>, #tpu.dimension_semantics<parallel>], iteration_bounds = array<i64: 2, 1>, scalar_prefetch = 0 : i64, scratch_operands = 0 : i64, tpu.core_type = #tpu.core_type<tc>, window_params = [{transform_indices = @transform_0, window_bounds = array<i64: 1, 1, 32, 144>}, {transform_indices = @transform_1, window_bounds = array<i64: 1, 144, 512>}, {pipeline_mode = #tpu.pipeline_mode<synchronous>, transform_indices = @transform_2, window_bounds = array<i64: 32, 1>}, {transform_indices = @transform_3, window_bounds = array<i64: 1, 32, 512>}, {transform_indices = @transform_4, window_bounds = array<i64: 1, 32, 512>}]} {
    %c0 = arith.constant 0 : index
    %c0_0 = arith.constant 0 : index
    %c0_1 = arith.constant 0 : index
    %c0_2 = arith.constant 0 : index
    %0 = vector.load %arg2[%c0, %c0_0, %c0_1, %c0_2] : memref<1x1x32x144xf32, #tpu.memory_space<vmem>>, vector<1x1x32x144xf32>
    %1 = vector.shape_cast %0 : vector<1x1x32x144xf32> to vector<32x144xf32>
    %c0_3 = arith.constant 0 : index
    %c0_4 = arith.constant 0 : index
    %c0_5 = arith.constant 0 : index
    %2 = vector.load %arg3[%c0_3, %c0_4, %c0_5] : memref<1x144x512xf32, #tpu.memory_space<vmem>>, vector<1x144x512xf32>
    %3 = vector.shape_cast %2 : vector<1x144x512xf32> to vector<144x512xf32>
    %cst = arith.constant dense<0.000000e+00> : vector<32x512xf32>
    %4 = tpu.matmul %1, %3, %cst {dimension_numbers = #tpu.dot_dimension_numbers<[1], [0], [0], [1], [0, 0, 1, 1], [], []>} : vector<32x144xf32>, vector<144x512xf32>, vector<32x512xf32> -> vector<32x512xf32>
    %c0_6 = arith.constant 0 : index
    %c0_7 = arith.constant 0 : index
    %5 = vector.load %arg4[%c0_6, %c0_7] : memref<32x1xf32, #tpu.memory_space<vmem>>, vector<32x1xf32>
    %6 = vector.broadcast %5 : vector<32x1xf32> to vector<32x512xf32>
    %7 = arith.addf %4, %6 : vector<32x512xf32>
    %cst_8 = arith.constant 0.00999999977 : f32
    %8 = vector.broadcast %cst_8 : f32 to vector<32x512xf32>
    %9 = arith.mulf %8, %7 : vector<32x512xf32>
    %10 = arith.maximumf %7, %9 : vector<32x512xf32>
    %c0_9 = arith.constant 0 : index
    %c0_10 = arith.constant 0 : index
    %c0_11 = arith.constant 0 : index
    %11 = vector.load %arg5[%c0_9, %c0_10, %c0_11] : memref<1x32x512xf32, #tpu.memory_space<vmem>>, vector<1x32x512xf32>
    %12 = vector.shape_cast %11 : vector<1x32x512xf32> to vector<32x512xf32>
    %13 = arith.addf %10, %12 : vector<32x512xf32>
    %c0_12 = arith.constant 0 : index
    %c0_13 = arith.constant 0 : index
    %c0_14 = arith.constant 0 : index
    %14 = vector.load %arg6[%c0_12, %c0_13, %c0_14] : memref<1x32x512xf32, #tpu.memory_space<vmem>>, vector<1x32x512xf32>
    %15 = vector.shape_cast %14 : vector<1x32x512xf32> to vector<32x512xf32>
    %16 = vector.shape_cast %13 : vector<32x512xf32> to vector<1x32x512xf32>
    tpu.vector_store %arg6[%c0_12, %c0_13, %c0_14], %16 {strides = array<i32>} : memref<1x32x512xf32, #tpu.memory_space<vmem>>, vector<1x32x512xf32>,
    return
  }
  func.func @transform_0(%arg0: i32, %arg1: i32) -> (i32, i32, i32, i32) {
    %c0_i32 = arith.constant 0 : i32
    %c0_i32_0 = arith.constant 0 : i32
    %c0_i32_1 = arith.constant 0 : i32
    return %arg1, %arg0, %c0_i32, %c0_i32_0 : i32, i32, i32, i32
  }
  func.func @transform_1(%arg0: i32, %arg1: i32) -> (i32, i32, i32) {
    %c0_i32 = arith.constant 0 : i32
    %c0_i32_0 = arith.constant 0 : i32
    %c0_i32_1 = arith.constant 0 : i32
    return %arg0, %c0_i32, %c0_i32_0 : i32, i32, i32
  }
  func.func @transform_2(%arg0: i32, %arg1: i32) -> (i32, i32) {
    %c0_i32 = arith.constant 0 : i32
    %c0_i32_0 = arith.constant 0 : i32
    %c0_i32_1 = arith.constant 0 : i32
    return %c0_i32, %c0_i32_0 : i32, i32
  }
  func.func @transform_3(%arg0: i32, %arg1: i32) -> (i32, i32, i32) {
    %c0_i32 = arith.constant 0 : i32
    %c0_i32_0 = arith.constant 0 : i32
    return %arg1, %c0_i32, %arg0 : i32, i32, i32
  }
  func.func @transform_4(%arg0: i32, %arg1: i32) -> (i32, i32, i32) {
    %c0_i32 = arith.constant 0 : i32
    %c0_i32_0 = arith.constant 0 : i32
    return %arg1, %c0_i32, %arg0 : i32, i32, i32
  }
}

</mosaic_0001>

<llo_original>
// kernel: tile.8
$region0: #{tile.8}
  #allocation0 [shape = 's32[1]{0}', space=sflag, size = 0x4, scoped, tag = 'scoped memory for tile.8']
  %s0 = inlined_call_operand.vmem [shape: f32[8], index: 0, kind: input, shape index: {}]
  %s1 = inlined_call_operand.vmem [shape: f32[4,8], index: 1, kind: output, shape index: {}]
  // Predicated region
  $region2: #{tile.8} parent=0 // pred_check
    _
  $region3: #{tile.8} parent=0 // pred_check_branch
    %3 = sbr.rel (0) target = $region5
  $region4: #{tile.8} parent=0 // pred_region
    _
  $region5: #{tile.8} parent=0 // pred_fallthru
    _
  %v4 = vld [vmem:[%s0] ss:$0 sm:$0xff]
  %5 = vst [vmem:[%s1] sm:$0xf] %v4

// kernel: tile.0
$region0: #{tile.0}
  %s0 = inlined_call_operand.vmem [shape: f32[4,8], index: 0, kind: input, shape index: {}]
  %s1 = inlined_call_operand.vmem [shape: f32[32,1], index: 1, kind: output, shape index: {}]
  $region1: #{tile.0} parent=0
    #allocation0 [shape = 'u8[4096]{0}', space=vmem, size = 0x1000, scoped, tag = 'scoped mem for input reshape']
    %s3 = sshllo.u32 0, 4
    %v4 = vld [vmem:[%s0] sm:%s3]
    %5 = vst [vmem:[#allocation0] sm:%s3] %v4
    %v6 = vld [vmem:[#allocation0] sm:$0xf]
    %vm7 = vcmask 7168
    %8 = vst.msk [vmem:[%s1] ss:$8 sm:$0xf] %vm7, %v6
    %v9 = vld [vmem:[#allocation0] sm:$0xf]
    %10 = vrot.lane.b32.xlu0 %v9, 127
    %v11 = vpop.permute.xlu0 %10
    %vm12 = vcmask 7168
    %s13 = scalar_lea.vmem %s1, 1
    %14 = vst.msk [vmem:[%s13] ss:$8 sm:$0xf] %vm12, %v11
    %v15 = vld [vmem:[#allocation0] sm:$0xf]
    %16 = vrot.lane.b32.xlu0 %v15, 126
    %v17 = vpop.permute.xlu0 %16
    %vm18 = vcmask 7168
    %s19 = scalar_lea.vmem %s1, 2
    %20 = vst.msk [vmem:[%s19] ss:$8 sm:$0xf] %vm18, %v17
    %v21 = vld [vmem:[#allocation0] sm:$0xf]
    %22 = vrot.lane.b32.xlu0 %v21, 125
    %v23 = vpop.permute.xlu0 %22
    %vm24 = vcmask 7168
    %s25 = scalar_lea.vmem %s1, 3
    %26 = vst.msk [vmem:[%s25] ss:$8 sm:$0xf] %vm24, %v23
    %v27 = vld [vmem:[#allocation0] sm:$0xf]
    %28 = vrot.lane.b32.xlu0 %v27, 124
    %v29 = vpop.permute.xlu0 %28
    %vm30 = vcmask 7168
    %s31 = scalar_lea.vmem %s1, 4
    %32 = vst.msk [vmem:[%s31] ss:$8 sm:$0xf] %vm30, %v29
    %v33 = vld [vmem:[#allocation0] sm:$0xf]
    %34 = vrot.lane.b32.xlu0 %v33, 123
    %v35 = vpop.permute.xlu0 %34
    %vm36 = vcmask 7168
    %s37 = scalar_lea.vmem %s1, 5
    %38 = vst.msk [vmem:[%s37] ss:$8 sm:$0xf] %vm36, %v35
    %v39 = vld [vmem:[#allocation0] sm:$0xf]
    %40 = vrot.lane.b32.xlu0 %v39, 122
    %v41 = vpop.permute.xlu0 %40
    %vm42 = vcmask 7168
    %s43 = scalar_lea.vmem %s1, 6
    %44 = vst.msk [vmem:[%s43] ss:$8 sm:$0xf] %vm42, %v41
    %v45 = vld [vmem:[#allocation0] sm:$0xf]
    %46 = vrot.lane.b32.xlu0 %v45, 121
    %v47 = vpop.permute.xlu0 %46
    %vm48 = vcmask 7168
    %s49 = scalar_lea.vmem %s1, 7
    %50 = vst.msk [vmem:[%s49] ss:$8 sm:$0xf] %vm48, %v47

// kernel: up_forward.1
$region0: #{up_forward.1}
  #allocation0 [shape = 'u32[]', space=smem, size = 0x4, offset = 0x4, fixed_abs, tag = 'smem constant byte address 0x4 - core index']
  #allocation1 [shape = 'u32[144,128]{1,0:T(1,128)}', space=vmem, size = 0x12000, scoped, tag = 'internal scratch']
  %s0 = inlined_call_operand.vmem [shape: f32[1,2,32,144], index: 0, kind: input, shape index: {}]
  %s1 = inlined_call_operand.vmem [shape: f32[2,144,512], index: 1, kind: input, shape index: {}]
  %s2 = inlined_call_operand.vmem [shape: f32[32,1], index: 2, kind: input, shape index: {}]
  %s3 = inlined_call_operand.vmem [shape: f32[1,32,1024], index: 3, kind: input, shape index: {}]
  %s4 = inlined_call_operand.vmem [shape: f32[1,32,1024], index: 4, kind: output, shape index: {}]
  %s5 = sld [smem:[#allocation0]]
  $region91: #{up_forward.1} parent=0
    _
  %s7 = ssub.s32 1, %s5
  %s8 = scalar_select 0, %s7, %s5
  $region1: #{up_forward.1} parent=0
    #allocation2 [shape = 'u8[131072]{0}', space=vmem, size = 0x20000, scoped, tag = 'input window, operand 3']
    #allocation3 [shape = 'u8[131072]{0}', space=vmem, size = 0x20000, scoped, tag = 'output window, operand 0']
    loop: start=0, step=1, limit=4
    $region2: #{up_forward.1} parent=1 // loop_pre_header
      _
    $region3: #{up_forward.1} parent=1 // loop_header
      %s10 = sphi 0, %s14
      %p11 = scmp.ge.s32.totalorder %s10, 4
      %s17 = sphi 0, %s29
      %s18 = sphi 0, %s25
      %s19 = sphi 0, %s17
      %s20 = sphi 0, %s18
      %s21 = sphi 0, %s19
      %s22 = sphi 0, %s20
      %s34 = sphi 0, %s36
      %s37 = sphi 0, %s34
      %s38 = sphi 0, %s37
      %s54 = sphi 0, %s38
      %s60 = sphi 0, %s62
      %s63 = sphi 0, %s60
      %s64 = sphi 0, %s63
      %s80 = sphi 0, %s64
      %s84 = sphi 0, %s84
      %s86 = sphi 0, %s84
      %s87 = sphi 0, %s86
      %s101 = sphi 0, %s87
      %s109 = sphi 0, %s111
      %s112 = sphi 0, %s109
      %s113 = sphi 0, %s112
      %s129 = sphi 0, %s113
      %s137 = sphi 0, %s139
      %s140 = sphi 0, %s137
      %s141 = sphi 0, %s140
      %s157 = sphi 0, %s141
    $region4: #{up_forward.1} parent=1 // loop_header_branch
      %13 = sbr.rel (%p11) target = $region8
    $region5: #{up_forward.1} parent=1 // loop_body
      %s15 = ssub.s32 %s10, 1
      %s16 = ssub.s32 %s10, 2
      %s23 = sadd.s32 1, %s18
      %p24 = scmp.ge.s32.totalorder %s23, 1
      %s25 = scalar_select %p24, 0, %s23
      %s26 = sadd.s32 1, %s17
      %s27 = scalar_select %p24, %s26, %s17
      %p28 = scmp.ge.s32.totalorder %s27, 2
      %s29 = scalar_select %p28, 0, %s27
      %s30 = ssub.s32 %s18, %s25
      %s31 = ssub.s32 %s17, %s29
      %s32 = sor.u32 %s30, %s31
      %p33 = scmp.eq.s32.totalorder %s32, 0
      %s35 = sadd.s32 %s34, 1
      %s36 = scalar_select %p33, %s34, %s35
      %p39 = pneg %p33
      %p40 = scmp.eq.s32.totalorder %s10, 1
      %p41 = por %p39, %p40
      %p42 = scmp.ne.s32.totalorder %s34, %s37
      %p43 = scmp.eq.s32.totalorder %s10, 0
      %p44 = por %p42, %p43
      %p45 = scmp.ne.s32.totalorder %s34, %s37
      %p46 = scmp.eq.s32.totalorder %s15, 1
      %p47 = por %p45, %p46
      %p48 = scmp.ne.s32.totalorder %s37, %s38
      %p49 = scmp.eq.s32.totalorder %s15, 0
      %p50 = por %p48, %p49
      %p51 = scmp.ne.s32.totalorder %s37, %s38
      %p52 = scmp.eq.s32.totalorder %s16, 1
      %p53 = por %p51, %p52
      %p55 = scmp.ne.s32.totalorder %s38, %s54
      %p56 = scmp.eq.s32.totalorder %s16, 0
      %p57 = por %p55, %p56
      %s58 = ssub.s32 %s17, %s29
      %p59 = scmp.eq.s32.totalorder %s58, 0
      %s61 = sadd.s32 %s60, 1
      %s62 = scalar_select %p59, %s60, %s61
      %p65 = pneg %p59
      %p66 = scmp.eq.s32.totalorder %s10, 1
      %p67 = por %p65, %p66
      %p68 = scmp.ne.s32.totalorder %s60, %s63
      %p69 = scmp.eq.s32.totalorder %s10, 0
      %p70 = por %p68, %p69
      %p71 = scmp.ne.s32.totalorder %s60, %s63
      %p72 = scmp.eq.s32.totalorder %s15, 1
      %p73 = por %p71, %p72
      %p74 = scmp.ne.s32.totalorder %s63, %s64
      %p75 = scmp.eq.s32.totalorder %s15, 0
      %p76 = por %p74, %p75
      %p77 = scmp.ne.s32.totalorder %s63, %s64
      %p78 = scmp.eq.s32.totalorder %s16, 1
      %p79 = por %p77, %p78
      %p81 = scmp.ne.s32.totalorder %s64, %s80
      %p82 = scmp.eq.s32.totalorder %s16, 0
      %p83 = por %p81, %p82
      %s85 = sadd.s32 %s84, 1
      %p88 = scmp.eq.s32.totalorder %s10, 1
      %p89 = scmp.ne.s32.totalorder %s84, %s86
      %p90 = scmp.eq.s32.totalorder %s10, 0
      %p91 = por %p89, %p90
      %p92 = scmp.ne.s32.totalorder %s84, %s86
      %p93 = scmp.eq.s32.totalorder %s15, 1
      %p94 = por %p92, %p93
      %p95 = scmp.ne.s32.totalorder %s86, %s87
      %p96 = scmp.eq.s32.totalorder %s15, 0
      %p97 = por %p95, %p96
      %p98 = scmp.ne.s32.totalorder %s86, %s87
      %p99 = scmp.eq.s32.totalorder %s16, 1
      %p100 = por %p98, %p99
      %p102 = scmp.ne.s32.totalorder %s87, %s101
      %p103 = scmp.eq.s32.totalorder %s16, 0
      %p104 = por %p102, %p103
      %s105 = ssub.s32 %s18, %s25
      %s106 = ssub.s32 %s17, %s29
      %s107 = sor.u32 %s105, %s106
      %p108 = scmp.eq.s32.totalorder %s107, 0
      %s110 = sadd.s32 %s109, 1
      %s111 = scalar_select %p108, %s109, %s110
      %p114 = pneg %p108
      %p115 = scmp.eq.s32.totalorder %s10, 1
      %p116 = por %p114, %p115
      %p117 = scmp.ne.s32.totalorder %s109, %s112
      %p118 = scmp.eq.s32.totalorder %s10, 0
      %p119 = por %p117, %p118
      %p120 = scmp.ne.s32.totalorder %s109, %s112
      %p121 = scmp.eq.s32.totalorder %s15, 1
      %p122 = por %p120, %p121
      %p123 = scmp.ne.s32.totalorder %s112, %s113
      %p124 = scmp.eq.s32.totalorder %s15, 0
      %p125 = por %p123, %p124
      %p126 = scmp.ne.s32.totalorder %s112, %s113
      %p127 = scmp.eq.s32.totalorder %s16, 1
      %p128 = por %p126, %p127
      %p130 = scmp.ne.s32.totalorder %s113, %s129
      %p131 = scmp.eq.s32.totalorder %s16, 0
      %p132 = por %p130, %p131
      %s133 = ssub.s32 %s18, %s25
      %s134 = ssub.s32 %s17, %s29
      %s135 = sor.u32 %s133, %s134
      %p136 = scmp.eq.s32.totalorder %s135, 0
      %s138 = sadd.s32 %s137, 1
      %s139 = scalar_select %p136, %s137, %s138
      %p142 = pneg %p136
      %p143 = scmp.eq.s32.totalorder %s10, 1
      %p144 = por %p142, %p143
      %p145 = scmp.ne.s32.totalorder %s137, %s140
      %p146 = scmp.eq.s32.totalorder %s10, 0
      %p147 = por %p145, %p146
      %p148 = scmp.ne.s32.totalorder %s137, %s140
      %p149 = scmp.eq.s32.totalorder %s15, 1
      %p150 = por %p148, %p149
      %p151 = scmp.ne.s32.totalorder %s140, %s141
      %p152 = scmp.eq.s32.totalorder %s15, 0
      %p153 = por %p151, %p152
      %p154 = scmp.ne.s32.totalorder %s140, %s141
      %p155 = scmp.eq.s32.totalorder %s16, 1
      %p156 = por %p154, %p155
      %p158 = scmp.ne.s32.totalorder %s141, %s157
      %p159 = scmp.eq.s32.totalorder %s16, 0
      %p160 = por %p158, %p159
      %p161 = scmp.le.s32.totalorder 1, %s10
      %p162 = scmp.lt.s32.totalorder %s10, 3
      %p163 = pnand %p161, %p162
      %p164 = pneg %p163
      // Predicated region
      $region9: #{up_forward.1} parent=5 // pred_check
        _
      $region10: #{up_forward.1} parent=5 // pred_check_branch
        %166 = sbr.rel (%p163) target = $region12
      $region11: #{up_forward.1} parent=5 // pred_region
        %s167 = ssub.s32 %s10, 1
        // Predicated region
        $region13: #{up_forward.1} parent=11 // pred_check
          %p168 = pneg %p97
        $region14: #{up_forward.1} parent=11 // pred_check_branch
          %170 = sbr.rel (%p168) target = $region16
        $region15: #{up_forward.1} parent=11 // pred_region
          _
        $region16: #{up_forward.1} parent=11 // pred_fallthru
          _
      $region12: #{up_forward.1} parent=5 // pred_fallthru
        _
      %p171 = scmp.lt.s32.totalorder %s10, 2
      // Predicated region
      $region17: #{up_forward.1} parent=5 // pred_check
        %p172 = pneg %p171
      $region18: #{up_forward.1} parent=5 // pred_check_branch
        %174 = sbr.rel (%p172) target = $region20
      $region19: #{up_forward.1} parent=5 // pred_region
        // Predicated region
        $region21: #{up_forward.1} parent=19 // pred_check
          %p175 = pneg %p44
        $region22: #{up_forward.1} parent=19 // pred_check_branch
          %177 = sbr.rel (%p175) target = $region24
        $region23: #{up_forward.1} parent=19 // pred_region
          %p178 = scmp.lt.s32.totalorder %s18, 0
          %s179 = scalar_select %p178, %s18, 0
          %p180 = scmp.lt.s32.totalorder %s17, 1
          %s181 = scalar_select %p180, %s17, 1
          %s182 = smul.addr %s181, 8
          %s183 = smul.addr %s179, 16
          %s184 = sadd.s32 %s182, %s183
          %s185 = smul.addr %s184, 8
          %s186 = scalar_lea.vmem %s0, %s185
        $region24: #{up_forward.1} parent=19 // pred_fallthru
          _
        // Predicated region
        $region25: #{up_forward.1} parent=19 // pred_check
          %p187 = pneg %p70
        $region26: #{up_forward.1} parent=19 // pred_check_branch
          %189 = sbr.rel (%p187) target = $region28
        $region27: #{up_forward.1} parent=19 // pred_region
          %p190 = scmp.lt.s32.totalorder %s17, 1
          %s191 = scalar_select %p190, %s17, 1
          %s192 = smul.addr %s191, 72
          %s193 = smul.addr %s192, 8
          %s194 = scalar_lea.vmem %s1, %s193
        $region28: #{up_forward.1} parent=19 // pred_fallthru
          _
        // Predicated region
        $region29: #{up_forward.1} parent=19 // pred_check
          %p195 = pneg %p119
        $region30: #{up_forward.1} parent=19 // pred_check_branch
          %197 = sbr.rel (%p195) target = $region32
        $region31: #{up_forward.1} parent=19 // pred_region
          %s198 = sand.u32 %s109, 1
          %s199 = sand.u32 %s109, 1
          %s200 = smul.addr %s199, 128
          %s201 = scalar_lea.vmem [#allocation2], %s200
          %s202 = smul.u32 4, %s17
          %s203 = smul.addr %s18, 32
          %s204 = sadd.s32 %s202, %s203
          %s205 = smul.addr %s204, 8
          %s206 = scalar_lea.vmem %s3, %s205
          // Predicated region
          $region33: #{up_forward.1} parent=31 // pred_check
            _
          $region34: #{up_forward.1} parent=31 // pred_check_branch
            %208 = sbr.rel (0) target = $region36
          $region35: #{up_forward.1} parent=31 // pred_region
            // Predicated region
            $region37: #{up_forward.1} parent=35 // pred_check
              _
            $region38: #{up_forward.1} parent=35 // pred_check_branch
              %210 = sbr.rel (0) target = $region40
            $region39: #{up_forward.1} parent=35 // pred_region
              loop: start=0, step=1, limit=1
              $region41: #{up_forward.1} parent=39 // loop_pre_header
                _
              $region42: #{up_forward.1} parent=39 // loop_header
                %s212 = sphi 0, %s216
                %p213 = scmp.ge.s32.totalorder %s212, 1
                %s217 = sphi %s206, %s206
                %s218 = sphi %s201, %s201
              $region43: #{up_forward.1} parent=39 // loop_header_branch
                %215 = sbr.rel (%p213) target = $region47
              $region44: #{up_forward.1} parent=39 // loop_body
                %v219 = vld [vmem:[%s217] sm:$0xff]
                %220 = vst [vmem:[%s218] sm:$0xff] %v219
                %v221 = vld [vmem:[%s217 + $0x8] sm:$0xff]
                %222 = vst [vmem:[%s218 + $0x8] sm:$0xff] %v221
                %v223 = vld [vmem:[%s217 + $0x10] sm:$0xff]
                %224 = vst [vmem:[%s218 + $0x10] sm:$0xff] %v223
                %v225 = vld [vmem:[%s217 + $0x18] sm:$0xff]
                %226 = vst [vmem:[%s218 + $0x18] sm:$0xff] %v225
                %v227 = vld [vmem:[%s217 + $0x40] sm:$0xff]
                %228 = vst [vmem:[%s218 + $0x20] sm:$0xff] %v227
                %v229 = vld [vmem:[%s217 + $0x48] sm:$0xff]
                %230 = vst [vmem:[%s218 + $0x28] sm:$0xff] %v229
                %v231 = vld [vmem:[%s217 + $0x50] sm:$0xff]
                %232 = vst [vmem:[%s218 + $0x30] sm:$0xff] %v231
                %v233 = vld [vmem:[%s217 + $0x58] sm:$0xff]
                %234 = vst [vmem:[%s218 + $0x38] sm:$0xff] %v233
                %v235 = vld [vmem:[%s217 + $0x80] sm:$0xff]
                %236 = vst [vmem:[%s218 + $0x40] sm:$0xff] %v235
                %v237 = vld [vmem:[%s217 + $0x88] sm:$0xff]
                %238 = vst [vmem:[%s218 + $0x48] sm:$0xff] %v237
                %v239 = vld [vmem:[%s217 + $0x90] sm:$0xff]
                %240 = vst [vmem:[%s218 + $0x50] sm:$0xff] %v239
                %v241 = vld [vmem:[%s217 + $0x98] sm:$0xff]
                %242 = vst [vmem:[%s218 + $0x58] sm:$0xff] %v241
                %v243 = vld [vmem:[%s217 + $0xc0] sm:$0xff]
                %244 = vst [vmem:[%s218 + $0x60] sm:$0xff] %v243
                %v245 = vld [vmem:[%s217 + $0xc8] sm:$0xff]
                %246 = vst [vmem:[%s218 + $0x68] sm:$0xff] %v245
                %v247 = vld [vmem:[%s217 + $0xd0] sm:$0xff]
                %248 = vst [vmem:[%s218 + $0x70] sm:$0xff] %v247
                %v249 = vld [vmem:[%s217 + $0xd8] sm:$0xff]
                %250 = vst [vmem:[%s218 + $0x78] sm:$0xff] %v249
              $region45: #{up_forward.1} parent=39 // loop_footer
                %s216 = sadd.s32 1, %s212
              $region46: #{up_forward.1} parent=39 // loop_footer_branch
                %211 = sbr.rel target = $region42
              $region47: #{up_forward.1} parent=39 // loop_exit
                _
            $region40: #{up_forward.1} parent=35 // pred_fallthru
              _
            // Predicated region
            $region48: #{up_forward.1} parent=35 // pred_check
              _
            $region49: #{up_forward.1} parent=35 // pred_check_branch
              %252 = sbr.rel target = $region51
            $region50: #{up_forward.1} parent=35 // pred_region
              _
            $region51: #{up_forward.1} parent=35 // pred_fallthru
              _
          $region36: #{up_forward.1} parent=31 // pred_fallthru
            _
          %253 = vnop
        $region32: #{up_forward.1} parent=19 // pred_fallthru
          _
      $region20: #{up_forward.1} parent=5 // pred_fallthru
        _
      %p254 = scmp.le.s32.totalorder 1, %s10
      %p255 = scmp.lt.s32.totalorder %s10, 3
      %p256 = pnand %p254, %p255
      %p257 = pneg %p256
      // Predicated region
      $region52: #{up_forward.1} parent=5 // pred_check
        _
      $region53: #{up_forward.1} parent=5 // pred_check_branch
        %259 = sbr.rel (%p256) target = $region55
      $region54: #{up_forward.1} parent=5 // pred_region
        %s260 = ssub.s32 %s10, 1
        %s261 = sand.u32 %s112, 1
        %s262 = sand.u32 %s112, 1
        %s263 = smul.addr %s262, 128
        %s264 = scalar_lea.vmem [#allocation2], %s263
        // Predicated region
        $region56: #{up_forward.1} parent=54 // pred_check
          %p265 = pneg %p125
        $region57: #{up_forward.1} parent=54 // pred_check_branch
          %267 = sbr.rel (%p265) target = $region59
        $region58: #{up_forward.1} parent=54 // pred_region
          _
        $region59: #{up_forward.1} parent=54 // pred_fallthru
          _
        %p268 = scmp.lt.s32.totalorder %s20, 0
        %s269 = scalar_select %p268, %s20, 0
        %p270 = scmp.lt.s32.totalorder %s19, 1
        %s271 = scalar_select %p270, %s19, 1
        %s272 = smul.addr %s271, 8
        %s273 = smul.addr %s269, 16
        %s274 = sadd.s32 %s272, %s273
        %s275 = smul.addr %s274, 8
        %s276 = scalar_lea.vmem %s0, %s275
        %p277 = pneg %p50
        %p278 = pneg %p47
        %p279 = scmp.lt.s32.totalorder %s19, 1
        %s280 = scalar_select %p279, %s19, 1
        %s281 = smul.addr %s280, 72
        %s282 = smul.addr %s281, 8
        %s283 = scalar_lea.vmem %s1, %s282
        %p284 = pneg %p76
        %p285 = pneg %p73
        %p286 = pneg %p97
        %p287 = pneg %p94
        %s288 = sand.u32 %s112, 1
        %s289 = sand.u32 %s112, 1
        %s290 = smul.addr %s289, 128
        %s291 = scalar_lea.vmem [#allocation2], %s290
        %p292 = pneg %p125
        %p293 = pneg %p122
        %p294 = pneg %p153
        %p295 = pneg %p150
        %s296 = sand.u32 %s140, 1
        %s297 = sand.u32 %s140, 1
        %s298 = smul.addr %s297, 128
        %s299 = scalar_lea.vmem [#allocation3], %s298
        %p300 = scmp.lt.s32.totalorder %s20, 0
        %s301 = scalar_select %p300, %s20, 0
        %p302 = scmp.lt.s32.totalorder %s19, 1
        %s303 = scalar_select %p302, %s19, 1
        %s304 = smul.addr %s303, 8
        %s305 = smul.addr %s301, 16
        %s306 = sadd.s32 %s304, %s305
        %s307 = smul.addr %s306, 8
        %s308 = scalar_lea.vmem %s0, %s307
        %p309 = scmp.lt.s32.totalorder %s19, 1
        %s310 = scalar_select %p309, %s19, 1
        %s311 = smul.addr %s310, 72
        %s312 = smul.addr %s311, 8
        %s313 = scalar_lea.vmem %s1, %s312
        %s314 = smul.u32 4, %s19
        %s315 = smul.u32 4, %s19
        %v316 = vld [vmem:[%s308] sm:$0xff]
        %v317 = vld [vmem:[%s308 + $0x8] sm:$0xff]
        %v318 = vld [vmem:[%s308 + $0x10] sm:$0xff]
        %v319 = vld [vmem:[%s308 + $0x18] sm:$0xff]
        %v320 = vld [vmem:[%s308 + $0x20] sm:$0xff]
        %v321 = vld [vmem:[%s308 + $0x28] sm:$0xff]
        %v322 = vld [vmem:[%s308 + $0x30] sm:$0xff]
        %v323 = vld [vmem:[%s308 + $0x38] sm:$0xff]
        %v324 = vld [vmem:[%s313] sm:$0xff]
        %v325 = vld [vmem:[%s313 + $0x8] sm:$0xff]
        %v326 = vld [vmem:[%s313 + $0x10] sm:$0xff]
        %v327 = vld [vmem:[%s313 + $0x18] sm:$0xff]
        %v328 = vld [vmem:[%s313 + $0x20] sm:$0xff]
        %v329 = vld [vmem:[%s313 + $0x28] sm:$0xff]
        %v330 = vld [vmem:[%s313 + $0x30] sm:$0xff]
        %v331 = vld [vmem:[%s313 + $0x38] sm:$0xff]
        %v332 = vld [vmem:[%s313 + $0x40] sm:$0xff]
        %v333 = vld [vmem:[%s313 + $0x48] sm:$0xff]
        %v334 = vld [vmem:[%s313 + $0x50] sm:$0xff]
        %v335 = vld [vmem:[%s313 + $0x58] sm:$0xff]
        %v336 = vld [vmem:[%s313 + $0x60] sm:$0xff]
        %v337 = vld [vmem:[%s313 + $0x68] sm:$0xff]
        %v338 = vld [vmem:[%s313 + $0x70] sm:$0xff]
        %v339 = vld [vmem:[%s313 + $0x78] sm:$0xff]
        %v340 = vld [vmem:[%s313 + $0x80] sm:$0xff]
        %v341 = vld [vmem:[%s313 + $0x88] sm:$0xff]
        %v342 = vld [vmem:[%s313 + $0x90] sm:$0xff]
        %v343 = vld [vmem:[%s313 + $0x98] sm:$0xff]
        %v344 = vld [vmem:[%s313 + $0xa0] sm:$0xff]
        %v345 = vld [vmem:[%s313 + $0xa8] sm:$0xff]
        %v346 = vld [vmem:[%s313 + $0xb0] sm:$0xff]
        %v347 = vld [vmem:[%s313 + $0xb8] sm:$0xff]
        %v348 = vld [vmem:[%s313 + $0xc0] sm:$0xff]
        %v349 = vld [vmem:[%s313 + $0xc8] sm:$0xff]
        %v350 = vld [vmem:[%s313 + $0xd0] sm:$0xff]
        %v351 = vld [vmem:[%s313 + $0xd8] sm:$0xff]
        %v352 = vld [vmem:[%s313 + $0xe0] sm:$0xff]
        %v353 = vld [vmem:[%s313 + $0xe8] sm:$0xff]
        %v354 = vld [vmem:[%s313 + $0xf0] sm:$0xff]
        %v355 = vld [vmem:[%s313 + $0xf8] sm:$0xff]
        %v356 = vld [vmem:[%s313 + $0x100] sm:$0xff]
        %v357 = vld [vmem:[%s313 + $0x108] sm:$0xff]
        %v358 = vld [vmem:[%s313 + $0x110] sm:$0xff]
        %v359 = vld [vmem:[%s313 + $0x118] sm:$0xff]
        %v360 = vld [vmem:[%s313 + $0x120] sm:$0xff]
        %v361 = vld [vmem:[%s313 + $0x128] sm:$0xff]
        %v362 = vld [vmem:[%s313 + $0x130] sm:$0xff]
        %v363 = vld [vmem:[%s313 + $0x138] sm:$0xff]
        %v364 = vld [vmem:[%s313 + $0x140] sm:$0xff]
        %v365 = vld [vmem:[%s313 + $0x148] sm:$0xff]
        %v366 = vld [vmem:[%s313 + $0x150] sm:$0xff]
        %v367 = vld [vmem:[%s313 + $0x158] sm:$0xff]
        %v368 = vld [vmem:[%s313 + $0x160] sm:$0xff]
        %v369 = vld [vmem:[%s313 + $0x168] sm:$0xff]
        %v370 = vld [vmem:[%s313 + $0x170] sm:$0xff]
        %v371 = vld [vmem:[%s313 + $0x178] sm:$0xff]
        %v372 = vld [vmem:[%s313 + $0x180] sm:$0xff]
        %v373 = vld [vmem:[%s313 + $0x188] sm:$0xff]
        %v374 = vld [vmem:[%s313 + $0x190] sm:$0xff]
        %v375 = vld [vmem:[%s313 + $0x198] sm:$0xff]
        %v376 = vld [vmem:[%s313 + $0x1a0] sm:$0xff]
        %v377 = vld [vmem:[%s313 + $0x1a8] sm:$0xff]
        %v378 = vld [vmem:[%s313 + $0x1b0] sm:$0xff]
        %v379 = vld [vmem:[%s313 + $0x1b8] sm:$0xff]
        %v380 = vld [vmem:[%s313 + $0x1c0] sm:$0xff]
        %v381 = vld [vmem:[%s313 + $0x1c8] sm:$0xff]
        %v382 = vld [vmem:[%s313 + $0x1d0] sm:$0xff]
        %v383 = vld [vmem:[%s313 + $0x1d8] sm:$0xff]
        %v384 = vld [vmem:[%s313 + $0x1e0] sm:$0xff]
        %v385 = vld [vmem:[%s313 + $0x1e8] sm:$0xff]
        %v386 = vld [vmem:[%s313 + $0x1f0] sm:$0xff]
        %v387 = vld [vmem:[%s313 + $0x1f8] sm:$0xff]
        %v388 = vld [vmem:[%s313 + $0x200] sm:$0xff]
        %v389 = vld [vmem:[%s313 + $0x208] sm:$0xff]
        %v390 = vld [vmem:[%s313 + $0x210] sm:$0xff]
        %v391 = vld [vmem:[%s313 + $0x218] sm:$0xff]
        %v392 = vld [vmem:[%s313 + $0x220] sm:$0xff]
        %v393 = vld [vmem:[%s313 + $0x228] sm:$0xff]
        %v394 = vld [vmem:[%s313 + $0x230] sm:$0xff]
        %v395 = vld [vmem:[%s313 + $0x238] sm:$0xff]
        %v396 = vld [vmem:[%s2] sm:$0xff]
        %v397 = vld [vmem:[%s2 + $0x8] sm:$0xff]
        %v398 = vld [vmem:[%s2 + $0x10] sm:$0xff]
        %v399 = vld [vmem:[%s2 + $0x18] sm:$0xff]
        %401 = vset.pattern.permute.xlu0 0
        %402 = vperm.xlu0 %401, %v396
        %v403 = vpop.permute.xlu0 %402
        %406 = vset.pattern.permute.xlu0 0
        %407 = vperm.xlu0 %406, %v397
        %v408 = vpop.permute.xlu0 %407
        %411 = vset.pattern.permute.xlu0 0
        %412 = vperm.xlu0 %411, %v398
        %v413 = vpop.permute.xlu0 %412
        %416 = vset.pattern.permute.xlu0 0
        %417 = vperm.xlu0 %416, %v399
        %v418 = vpop.permute.xlu0 %417
        %vm420 = vcmask 130048
        %v422 = vsel %vm420, %v317, 0
        %v425 = vsel %vm420, %v319, 0
        %v428 = vsel %vm420, %v321, 0
        %v431 = vsel %vm420, %v323, 0
        %433 = vmatprep.subr.mxu0 %v325
        %434 = vmatpush1.msra.mxu0 %v324
        %435 = vmatprep.subr.mxu0 %v329
        %436 = vmatpush1.msra.mxu0 %v328
        %437 = vmatprep.subr.mxu0 %v333
        %438 = vmatpush1.msra.mxu0 %v332
        %439 = vmatprep.subr.mxu0 %v337
        %440 = vmatpush1.msra.mxu0 %v336
        %441 = vmatprep.subr.mxu0 %v341
        %442 = vmatpush1.msra.mxu0 %v340
        %443 = vmatprep.subr.mxu0 %v345
        %444 = vmatpush1.msra.mxu0 %v344
        %445 = vmatprep.subr.mxu0 %v349
        %446 = vmatpush1.msra.mxu0 %v348
        %447 = vmatprep.subr.mxu0 %v353
        %448 = vmatpush1.msra.mxu0 %v352
        %449 = vmatprep.subr.mxu0 %v357
        %450 = vmatpush1.msra.mxu0 %v356
        %451 = vmatprep.subr.mxu0 %v361
        %452 = vmatpush1.msra.mxu0 %v360
        %453 = vmatprep.subr.mxu0 %v365
        %454 = vmatpush1.msra.mxu0 %v364
        %455 = vmatprep.subr.mxu0 %v369
        %456 = vmatpush1.msra.mxu0 %v368
        %457 = vmatprep.subr.mxu0 %v373
        %458 = vmatpush1.msra.mxu0 %v372
        %459 = vmatprep.subr.mxu0 %v377
        %460 = vmatpush1.msra.mxu0 %v376
        %461 = vmatprep.subr.mxu0 %v381
        %462 = vmatpush1.msra.mxu0 %v380
        %463 = vmatprep.subr.mxu0 %v385
        %464 = vmatpush1.msra.mxu0 %v384
        %465 = vmatprep.subr.mxu0 %v389
        %466 = vmatpush1.msra.mxu0 %v388
        %467 = vmatprep.subr.mxu0 %v393
        %468 = vmatpush1.msra.mxu0 %v392
        %469 = vmatprep.subr.mxu0 0.0
        %470 = vmatpush1.msra.mxu0 0.0
        %471 = vmatprep.subr.mxu0 0.0
        %472 = vmatpush1.msra.mxu0 0.0
        %473 = vmatprep.subr.mxu0 0.0
        %474 = vmatpush1.msra.mxu0 0.0
        %475 = vmatprep.subr.mxu0 0.0
        %476 = vmatpush1.msra.mxu0 0.0
        %477 = vmatprep.subr.mxu0 0.0
        %478 = vmatpush1.msra.mxu0 0.0
        %479 = vmatprep.subr.mxu0 0.0
        %480 = vmatpush1.msra.mxu0 0.0
        %481 = vmatprep.subr.mxu0 0.0
        %482 = vmatpush1.msra.mxu0 0.0
        %483 = vmatprep.subr.mxu0 0.0
        %484 = vmatpush1.msra.mxu0 0.0
        %485 = vmatprep.subr.mxu0 0.0
        %486 = vmatpush1.msra.mxu0 0.0
        %487 = vmatprep.subr.mxu0 0.0
        %488 = vmatpush1.msra.mxu0 0.0
        %489 = vmatprep.subr.mxu0 0.0
        %490 = vmatpush1.msra.mxu0 0.0
        %491 = vmatprep.subr.mxu0 0.0
        %492 = vmatpush1.msra.mxu0 0.0
        %493 = vmatprep.subr.mxu0 0.0
        %494 = vmatpush1.msra.mxu0 0.0
        %495 = vmatprep.subr.mxu0 0.0
        %496 = vmatpush1.msra.mxu0 0.0
        %497 = vmatprep.mubr.f32.mxu0 %v422
        %498 = vmatmul.mubr.f32.gmra.mrb[0].mxu0 %v316
        %v499 = vpop.f32.mrb[0].mxu0
        %v500 = vadd.f32 %v403, %v499
        %v501 = vpop.f32.mrb[0].mxu0
        %v502 = vadd.f32 %v403, %v501
        %503 = vmatprep.mubr.f32.mxu0 %v425
        %504 = vmatmul.mubr.f32.gmra.mrb[0].mxu0 %v318
        %v505 = vpop.f32.mrb[0].mxu0
        %v506 = vadd.f32 %v408, %v505
        %v507 = vpop.f32.mrb[0].mxu0
        %v508 = vadd.f32 %v408, %v507
        %509 = vmatprep.mubr.f32.mxu0 %v428
        %510 = vmatmul.mubr.f32.gmra.mrb[0].mxu0 %v320
        %v511 = vpop.f32.mrb[0].mxu0
        %v512 = vadd.f32 %v413, %v511
        %v513 = vpop.f32.mrb[0].mxu0
        %v514 = vadd.f32 %v413, %v513
        %515 = vmatprep.mubr.f32.mxu0 %v431
        %516 = vmatmul.mubr.f32.gmra.mrb[0].mxu0 %v322
        %v517 = vpop.f32.mrb[0].mxu0
        %v518 = vadd.f32 %v418, %v517
        %v519 = vpop.f32.mrb[0].mxu0
        %v520 = vadd.f32 %v418, %v519
        %521 = vdwg.mxu0
        %522 = vmatprep.subr.mxu0 %v327
        %523 = vmatpush1.msra.mxu0 %v326
        %524 = vmatprep.subr.mxu0 %v331
        %525 = vmatpush1.msra.mxu0 %v330
        %526 = vmatprep.subr.mxu0 %v335
        %527 = vmatpush1.msra.mxu0 %v334
        %528 = vmatprep.subr.mxu0 %v339
        %529 = vmatpush1.msra.mxu0 %v338
        %530 = vmatprep.subr.mxu0 %v343
        %531 = vmatpush1.msra.mxu0 %v342
        %532 = vmatprep.subr.mxu0 %v347
        %533 = vmatpush1.msra.mxu0 %v346
        %534 = vmatprep.subr.mxu0 %v351
        %535 = vmatpush1.msra.mxu0 %v350
        %536 = vmatprep.subr.mxu0 %v355
        %537 = vmatpush1.msra.mxu0 %v354
        %538 = vmatprep.subr.mxu0 %v359
        %539 = vmatpush1.msra.mxu0 %v358
        %540 = vmatprep.subr.mxu0 %v363
        %541 = vmatpush1.msra.mxu0 %v362
        %542 = vmatprep.subr.mxu0 %v367
        %543 = vmatpush1.msra.mxu0 %v366
        %544 = vmatprep.subr.mxu0 %v371
        %545 = vmatpush1.msra.mxu0 %v370
        %546 = vmatprep.subr.mxu0 %v375
        %547 = vmatpush1.msra.mxu0 %v374
        %548 = vmatprep.subr.mxu0 %v379
        %549 = vmatpush1.msra.mxu0 %v378
        %550 = vmatprep.subr.mxu0 %v383
        %551 = vmatpush1.msra.mxu0 %v382
        %552 = vmatprep.subr.mxu0 %v387
        %553 = vmatpush1.msra.mxu0 %v386
        %554 = vmatprep.subr.mxu0 %v391
        %555 = vmatpush1.msra.mxu0 %v390
        %556 = vmatprep.subr.mxu0 %v395
        %557 = vmatpush1.msra.mxu0 %v394
        %558 = vmatprep.subr.mxu0 0.0
        %559 = vmatpush1.msra.mxu0 0.0
        %560 = vmatprep.subr.mxu0 0.0
        %561 = vmatpush1.msra.mxu0 0.0
        %562 = vmatprep.subr.mxu0 0.0
        %563 = vmatpush1.msra.mxu0 0.0
        %564 = vmatprep.subr.mxu0 0.0
        %565 = vmatpush1.msra.mxu0 0.0
        %566 = vmatprep.subr.mxu0 0.0
        %567 = vmatpush1.msra.mxu0 0.0
        %568 = vmatprep.subr.mxu0 0.0
        %569 = vmatpush1.msra.mxu0 0.0
        %570 = vmatprep.subr.mxu0 0.0
        %571 = vmatpush1.msra.mxu0 0.0
        %572 = vmatprep.subr.mxu0 0.0
        %573 = vmatpush1.msra.mxu0 0.0
        %574 = vmatprep.subr.mxu0 0.0
        %575 = vmatpush1.msra.mxu0 0.0
        %576 = vmatprep.subr.mxu0 0.0
        %577 = vmatpush1.msra.mxu0 0.0
        %578 = vmatprep.subr.mxu0 0.0
        %579 = vmatpush1.msra.mxu0 0.0
        %580 = vmatprep.subr.mxu0 0.0
        %581 = vmatpush1.msra.mxu0 0.0
        %582 = vmatprep.subr.mxu0 0.0
        %583 = vmatpush1.msra.mxu0 0.0
        %584 = vmatprep.subr.mxu0 0.0
        %585 = vmatpush1.msra.mxu0 0.0
        %586 = vmatprep.mubr.f32.mxu0 %v422
        %587 = vmatmul.mubr.f32.gmra.mrb[0].mxu0 %v316
        %v588 = vpop.f32.mrb[0].mxu0
        %v589 = vadd.f32 %v403, %v588
        %v590 = vpop.f32.mrb[0].mxu0
        %v591 = vadd.f32 %v403, %v590
        %592 = vmatprep.mubr.f32.mxu0 %v425
        %593 = vmatmul.mubr.f32.gmra.mrb[0].mxu0 %v318
        %v594 = vpop.f32.mrb[0].mxu0
        %v595 = vadd.f32 %v408, %v594
        %v596 = vpop.f32.mrb[0].mxu0
        %v597 = vadd.f32 %v408, %v596
        %598 = vmatprep.mubr.f32.mxu0 %v428
        %599 = vmatmul.mubr.f32.gmra.mrb[0].mxu0 %v320
        %v600 = vpop.f32.mrb[0].mxu0
        %v601 = vadd.f32 %v413, %v600
        %v602 = vpop.f32.mrb[0].mxu0
        %v603 = vadd.f32 %v413, %v602
        %604 = vmatprep.mubr.f32.mxu0 %v431
        %605 = vmatmul.mubr.f32.gmra.mrb[0].mxu0 %v322
        %v606 = vpop.f32.mrb[0].mxu0
        %v607 = vadd.f32 %v418, %v606
        %v608 = vpop.f32.mrb[0].mxu0
        %v609 = vadd.f32 %v418, %v608
        %610 = vdwg.mxu0
        %v611 = vmul.f32 %v500, 0.01
        %v612 = vmul.f32 %v502, 0.01
        %v613 = vmul.f32 %v589, 0.01
        %v614 = vmul.f32 %v591, 0.01
        %v615 = vmul.f32 %v506, 0.01
        %v616 = vmul.f32 %v508, 0.01
        %v617 = vmul.f32 %v595, 0.01
        %v618 = vmul.f32 %v597, 0.01
        %v619 = vmul.f32 %v512, 0.01
        %v620 = vmul.f32 %v514, 0.01
        %v621 = vmul.f32 %v601, 0.01
        %v622 = vmul.f32 %v603, 0.01
        %v623 = vmul.f32 %v518, 0.01
        %v624 = vmul.f32 %v520, 0.01
        %v625 = vmul.f32 %v607, 0.01
        %v626 = vmul.f32 %v609, 0.01
        %v627 = vmax.f32 %v500, %v611
        %v628 = vmax.f32 %v502, %v612
        %v629 = vmax.f32 %v589, %v613
        %v630 = vmax.f32 %v591, %v614
        %v631 = vmax.f32 %v506, %v615
        %v632 = vmax.f32 %v508, %v616
        %v633 = vmax.f32 %v595, %v617
        %v634 = vmax.f32 %v597, %v618
        %v635 = vmax.f32 %v512, %v619
        %v636 = vmax.f32 %v514, %v620
        %v637 = vmax.f32 %v601, %v621
        %v638 = vmax.f32 %v603, %v622
        %v639 = vmax.f32 %v518, %v623
        %v640 = vmax.f32 %v520, %v624
        %v641 = vmax.f32 %v607, %v625
        %v642 = vmax.f32 %v609, %v626
        %v643 = vld [vmem:[%s264] sm:$0xff]
        %v644 = vld [vmem:[%s264 + $0x8] sm:$0xff]
        %v645 = vld [vmem:[%s264 + $0x10] sm:$0xff]
        %v646 = vld [vmem:[%s264 + $0x18] sm:$0xff]
        %v647 = vld [vmem:[%s264 + $0x20] sm:$0xff]
        %v648 = vld [vmem:[%s264 + $0x28] sm:$0xff]
        %v649 = vld [vmem:[%s264 + $0x30] sm:$0xff]
        %v650 = vld [vmem:[%s264 + $0x38] sm:$0xff]
        %v651 = vld [vmem:[%s264 + $0x40] sm:$0xff]
        %v652 = vld [vmem:[%s264 + $0x48] sm:$0xff]
        %v653 = vld [vmem:[%s264 + $0x50] sm:$0xff]
        %v654 = vld [vmem:[%s264 + $0x58] sm:$0xff]
        %v655 = vld [vmem:[%s264 + $0x60] sm:$0xff]
        %v656 = vld [vmem:[%s264 + $0x68] sm:$0xff]
        %v657 = vld [vmem:[%s264 + $0x70] sm:$0xff]
        %v658 = vld [vmem:[%s264 + $0x78] sm:$0xff]
        %v659 = vadd.f32 %v627, %v643
        %v660 = vadd.f32 %v628, %v644
        %v661 = vadd.f32 %v629, %v645
        %v662 = vadd.f32 %v630, %v646
        %v663 = vadd.f32 %v631, %v647
        %v664 = vadd.f32 %v632, %v648
        %v665 = vadd.f32 %v633, %v649
        %v666 = vadd.f32 %v634, %v650
        %v667 = vadd.f32 %v635, %v651
        %v668 = vadd.f32 %v636, %v652
        %v669 = vadd.f32 %v637, %v653
        %v670 = vadd.f32 %v638, %v654
        %v671 = vadd.f32 %v639, %v655
        %v672 = vadd.f32 %v640, %v656
        %v673 = vadd.f32 %v641, %v657
        %v674 = vadd.f32 %v642, %v658
        %675 = vst [vmem:[%s299] sm:$0xff] %v659
        %676 = vst [vmem:[%s299 + $0x8] sm:$0xff] %v660
        %677 = vst [vmem:[%s299 + $0x10] sm:$0xff] %v661
        %678 = vst [vmem:[%s299 + $0x18] sm:$0xff] %v662
        %679 = vst [vmem:[%s299 + $0x20] sm:$0xff] %v663
        %680 = vst [vmem:[%s299 + $0x28] sm:$0xff] %v664
        %681 = vst [vmem:[%s299 + $0x30] sm:$0xff] %v665
        %682 = vst [vmem:[%s299 + $0x38] sm:$0xff] %v666
        %683 = vst [vmem:[%s299 + $0x40] sm:$0xff] %v667
        %684 = vst [vmem:[%s299 + $0x48] sm:$0xff] %v668
        %685 = vst [vmem:[%s299 + $0x50] sm:$0xff] %v669
        %686 = vst [vmem:[%s299 + $0x58] sm:$0xff] %v670
        %687 = vst [vmem:[%s299 + $0x60] sm:$0xff] %v671
        %688 = vst [vmem:[%s299 + $0x68] sm:$0xff] %v672
        %689 = vst [vmem:[%s299 + $0x70] sm:$0xff] %v673
        %690 = vst [vmem:[%s299 + $0x78] sm:$0xff] %v674
        %s691 = sand.u32 %s140, 1
        %s692 = sand.u32 %s140, 1
        %s693 = smul.addr %s692, 128
        %s694 = scalar_lea.vmem [#allocation3], %s693
        // Predicated region
        $region60: #{up_forward.1} parent=54 // pred_check
          %p695 = pneg %p150
        $region61: #{up_forward.1} parent=54 // pred_check_branch
          %697 = sbr.rel (%p695) target = $region63
        $region62: #{up_forward.1} parent=54 // pred_region
          %s698 = smul.u32 4, %s19
          %s699 = smul.addr %s20, 32
          %s700 = sadd.s32 %s698, %s699
          %s701 = smul.addr %s700, 8
          %s702 = scalar_lea.vmem %s4, %s701
          // Predicated region
          $region64: #{up_forward.1} parent=62 // pred_check
            _
          $region65: #{up_forward.1} parent=62 // pred_check_branch
            %704 = sbr.rel (0) target = $region67
          $region66: #{up_forward.1} parent=62 // pred_region
            // Predicated region
            $region68: #{up_forward.1} parent=66 // pred_check
              _
            $region69: #{up_forward.1} parent=66 // pred_check_branch
              %706 = sbr.rel (0) target = $region71
            $region70: #{up_forward.1} parent=66 // pred_region
              loop: start=0, step=1, limit=1
              $region72: #{up_forward.1} parent=70 // loop_pre_header
                _
              $region73: #{up_forward.1} parent=70 // loop_header
                %s708 = sphi 0, %s712
                %p709 = scmp.ge.s32.totalorder %s708, 1
                %s713 = sphi %s694, %s694
                %s714 = sphi %s702, %s702
              $region74: #{up_forward.1} parent=70 // loop_header_branch
                %711 = sbr.rel (%p709) target = $region78
              $region75: #{up_forward.1} parent=70 // loop_body
                %v715 = vld [vmem:[%s713] sm:$0xff]
                %716 = vst [vmem:[%s714] sm:$0xff] %v715
                %v717 = vld [vmem:[%s713 + $0x8] sm:$0xff]
                %718 = vst [vmem:[%s714 + $0x8] sm:$0xff] %v717
                %v719 = vld [vmem:[%s713 + $0x10] sm:$0xff]
                %720 = vst [vmem:[%s714 + $0x10] sm:$0xff] %v719
                %v721 = vld [vmem:[%s713 + $0x18] sm:$0xff]
                %722 = vst [vmem:[%s714 + $0x18] sm:$0xff] %v721
                %v723 = vld [vmem:[%s713 + $0x20] sm:$0xff]
                %724 = vst [vmem:[%s714 + $0x40] sm:$0xff] %v723
                %v725 = vld [vmem:[%s713 + $0x28] sm:$0xff]
                %726 = vst [vmem:[%s714 + $0x48] sm:$0xff] %v725
                %v727 = vld [vmem:[%s713 + $0x30] sm:$0xff]
                %728 = vst [vmem:[%s714 + $0x50] sm:$0xff] %v727
                %v729 = vld [vmem:[%s713 + $0x38] sm:$0xff]
                %730 = vst [vmem:[%s714 + $0x58] sm:$0xff] %v729
                %v731 = vld [vmem:[%s713 + $0x40] sm:$0xff]
                %732 = vst [vmem:[%s714 + $0x80] sm:$0xff] %v731
                %v733 = vld [vmem:[%s713 + $0x48] sm:$0xff]
                %734 = vst [vmem:[%s714 + $0x88] sm:$0xff] %v733
                %v735 = vld [vmem:[%s713 + $0x50] sm:$0xff]
                %736 = vst [vmem:[%s714 + $0x90] sm:$0xff] %v735
                %v737 = vld [vmem:[%s713 + $0x58] sm:$0xff]
                %738 = vst [vmem:[%s714 + $0x98] sm:$0xff] %v737
                %v739 = vld [vmem:[%s713 + $0x60] sm:$0xff]
                %740 = vst [vmem:[%s714 + $0xc0] sm:$0xff] %v739
                %v741 = vld [vmem:[%s713 + $0x68] sm:$0xff]
                %742 = vst [vmem:[%s714 + $0xc8] sm:$0xff] %v741
                %v743 = vld [vmem:[%s713 + $0x70] sm:$0xff]
                %744 = vst [vmem:[%s714 + $0xd0] sm:$0xff] %v743
                %v745 = vld [vmem:[%s713 + $0x78] sm:$0xff]
                %746 = vst [vmem:[%s714 + $0xd8] sm:$0xff] %v745
              $region76: #{up_forward.1} parent=70 // loop_footer
                %s712 = sadd.s32 1, %s708
              $region77: #{up_forward.1} parent=70 // loop_footer_branch
                %707 = sbr.rel target = $region73
              $region78: #{up_forward.1} parent=70 // loop_exit
                _
            $region71: #{up_forward.1} parent=66 // pred_fallthru
              _
            // Predicated region
            $region79: #{up_forward.1} parent=66 // pred_check
              _
            $region80: #{up_forward.1} parent=66 // pred_check_branch
              %748 = sbr.rel target = $region82
            $region81: #{up_forward.1} parent=66 // pred_region
              _
            $region82: #{up_forward.1} parent=66 // pred_fallthru
              _
          $region67: #{up_forward.1} parent=62 // pred_fallthru
            _
          %749 = vnop
        $region63: #{up_forward.1} parent=54 // pred_fallthru
          _
      $region55: #{up_forward.1} parent=5 // pred_fallthru
        _
      %p750 = scmp.le.s32.totalorder 2, %s10
      // Predicated region
      $region83: #{up_forward.1} parent=5 // pred_check
        %p751 = pneg %p750
      $region84: #{up_forward.1} parent=5 // pred_check_branch
        %753 = sbr.rel (%p751) target = $region86
      $region85: #{up_forward.1} parent=5 // pred_region
        %s754 = ssub.s32 %s10, 2
        // Predicated region
        $region87: #{up_forward.1} parent=85 // pred_check
          %p755 = pneg %p156
        $region88: #{up_forward.1} parent=85 // pred_check_branch
          %757 = sbr.rel (%p755) target = $region90
        $region89: #{up_forward.1} parent=85 // pred_region
          %s758 = sand.u32 %s141, 1
          %s759 = sand.u32 %s141, 1
          %s760 = smul.addr %s759, 128
          %s761 = scalar_lea.vmem [#allocation3], %s760
        $region90: #{up_forward.1} parent=85 // pred_fallthru
          _
      $region86: #{up_forward.1} parent=5 // pred_fallthru
        _
    $region6: #{up_forward.1} parent=1 // loop_footer
      %s14 = sadd.s32 1, %s10
    $region7: #{up_forward.1} parent=1 // loop_footer_branch
      %9 = sbr.rel target = $region3
    $region8: #{up_forward.1} parent=1 // loop_exit
      _

</llo_original>
